<compile_context>
chip_gen: v7x
topology: tpu7x:2x2x1
jax: 0.10.0
libtpu: 0.0.40
codegen_flags: <defaults>
</compile_context>

<pallas_src>
import functools

import jax
import jax.numpy as jnp
import numpy as np
from jax import lax
from jax.experimental import pallas as pl
from jax.experimental.pallas import tpu as pltpu


# ------------------------------ fused kernel ---------------------------------

def _net_fused_kernel(x_ref, m1_ref, s1_ref, sh1_ref, m2_ref, s2_ref, sh2_ref,
                      wfc_ref, bfc_ref, o_ref, *, T1, half1, half2):
    """Whole NetConv2D forward for one batch tile, entirely in VMEM / vregs."""
    # ---- block 1: Conv2d(3x3,s=1,p=1) + BN + ReLU + MaxPool(2,2) ------------
    # Host packed per-output-row im2col taps (K1 = 3*W1*Cin) with conv-output
    # rows ordered [p | s | t] where h = 4t + 2s + p, so both pools below are
    # maxima of static contiguous slices.
    lhs1 = x_ref[...]                                   # (B, 4*T1, K1) bf16
    B, R1, K1 = lhs1.shape
    y1 = jnp.dot(lhs1.reshape(B * R1, K1), m1_ref[...],
                 preferred_element_type=jnp.float32).reshape(B, R1, -1)
    y1 = jnp.maximum(y1 * s1_ref[...] + sh1_ref[...], 0.0)     # folded BN + ReLU
    y1 = jnp.maximum(y1[..., :half1], y1[..., half1:])          # W-pool ([even w|odd w])
    pooled = jnp.maximum(y1[:, :2 * T1], y1[:, 2 * T1:])        # H-pool (over p)
    pe = pooled[:, :T1]                                 # even pooled rows k = 2t
    po = pooled[:, T1:]                                 # odd  pooled rows k = 2t+1

    # ---- block 2: Conv2d(3x3,s=1,p=1) + BN + ReLU + MaxPool(2,2) ------------
    # conv2 im2col taps (K2 = 3*W2*D1) built from register-resident pooled rows
    # (no VMEM scratch round trip); output rows ordered [even h2 | odd h2].
    zrow = jnp.zeros((B, 1, pe.shape[-1]), jnp.float32)
    o_dn = jnp.concatenate([zrow, po[:, :T1 - 1]], axis=1)      # row h2-1 of even h2
    e_up = jnp.concatenate([pe[:, 1:], zrow], axis=1)           # row h2+1 of odd h2
    lhs2 = jnp.concatenate(
        [jnp.concatenate([o_dn, pe, po], axis=-1),               # even h2 = 2u
         jnp.concatenate([pe, po, e_up], axis=-1)], axis=1)      # odd  h2 = 2u+1
    R2 = 2 * T1
    K2 = lhs2.shape[-1]
    lhs2 = lhs2.reshape(B * R2, K2).astype(jnp.bfloat16)
    z = jnp.dot(lhs2, m2_ref[...],
                preferred_element_type=jnp.float32).reshape(B, R2, -1)
    z = jnp.maximum(z * s2_ref[...] + sh2_ref[...], 0.0)        # folded BN + ReLU
    z = jnp.maximum(z[..., :half2], z[..., half2:])              # W-pool
    feats = jnp.maximum(z[:, :T1], z[:, T1:])                    # H-pool (B,Hp2,Wp2*D2)
    feats = feats.astype(jnp.bfloat16)

    # ---- flatten + Linear + Softmax(dim=1) ----------------------------------
    # One (B, Wp2*D2) @ (Wp2*D2, n_classes) matmul per feature row, tree-summed
    # (no serial add chain; avoids a sublane->lane relayout of a full flatten).
    n_rows = wfc_ref.shape[0]
    parts = [jnp.dot(feats[:, u, :], wfc_ref[u],
                     preferred_element_type=jnp.float32) for u in range(n_rows)]
    while len(parts) > 1:
        nxt = [parts[i] + parts[i + 1] for i in range(0, len(parts) - 1, 2)]
        if len(parts) % 2:
            nxt.append(parts[-1])
        parts = nxt
    logits = bfc_ref[...] + parts[0]                             # (B, n_classes) f32
    mx = jnp.max(logits, axis=-1, keepdims=True)
    e = jnp.exp(logits - mx)
    probs = e * pl.reciprocal(jnp.sum(e, axis=-1, keepdims=True))
    o_ref[0] = probs.astype(o_ref.dtype)


# --------------------------- host-side packing --------------------------------

def _build_im2col_conv_matrix(k_oihw, W):
    """3x3 'same' conv as ONE matmul: out_row(h) = taps(h) @ M, where taps(h) =
    [x_pad[h-1] | x_pad[h] | x_pad[h+1]] with (w, c)-ordered columns.  Output
    columns are ordered [all even w | all odd w] (Cout channels per w) so the
    in-kernel 2x2 W-pool is a max of two static column halves."""
    k = np.asarray(k_oihw, dtype=np.float32)          # PyTorch OIHW: (D, C, 3, 3)
    D, C, KH, KW = k.shape
    assert KH == 3 and KW == 3
    M = np.zeros((3 * W * C, W * D), dtype=np.float32)
    half = (W // 2) * D
    for w_out in range(W):
        col = (w_out % 2) * half + (w_out // 2) * D
        for di in range(3):
            for dj in range(3):
                w_in = w_out + dj - 1
                if 0 <= w_in < W:
                    r0 = di * W * C + w_in * C
                    M[r0:r0 + C, col:col + D] = k[:, :, di, dj].T
    return M


def _prep_input(x_nchw, pad_batch_to):
    """NCHW -> per-output-row im2col taps (K = 3*W*Cin) in bf16, with conv1
    output rows reordered so h = 4t + 2s + p lands at position
    p*(H/2) + s*(H/4) + t (makes both pools static-slice maxima)."""
    N, C, H, W = x_nchw.shape
    T1 = H // 4
    x = jnp.transpose(x_nchw, (0, 2, 3, 1)).reshape(N, H, W * C)
    xpad = jnp.pad(x, ((0, 0), (1, 1), (0, 0)))
    taps = jnp.concatenate([xpad[:, di:di + H, :] for di in range(3)], axis=-1)
    taps = taps.reshape(N, T1, 2, 2, 3 * W * C).transpose(0, 3, 2, 1, 4)
    taps = taps.reshape(N, H, 3 * W * C)
    if pad_batch_to > N:
        taps = jnp.pad(taps, ((0, pad_batch_to - N), (0, 0), (0, 0)))
    return taps.astype(jnp.bfloat16)


def _fold_bn(gamma, beta, mean, var, conv_bias, W, eps=1e-5):
    """Fold conv bias + BatchNorm2d (inference) into a (1, W*Cout) scale/shift."""
    scale = gamma / jnp.sqrt(var + eps)
    shift = beta + (conv_bias - mean) * scale
    D = scale.shape[0]
    return (jnp.tile(scale, W).reshape(1, W * D).astype(jnp.float32),
            jnp.tile(shift, W).reshape(1, W * D).astype(jnp.float32))


def pack_params(tp, hp, H1, W1, n_classes):
    """Turn PyTorch-layout parameters into the fused kernel's operands."""
    D2 = hp['conv2_ch_out']
    W2 = W1 // 2
    Hp2, Wp2 = H1 // 4, W1 // 4
    s1, sh1 = _fold_bn(tp['bn1_gamma'], tp['bn1_beta'], tp['bn1_mean'],
                       tp['bn1_var'], tp['conv1_b'], W1)
    s2, sh2 = _fold_bn(tp['bn2_gamma'], tp['bn2_beta'], tp['bn2_mean'],
                       tp['bn2_var'], tp['conv2_b'], W2)
    # fc.weight is PyTorch (n_classes, C*H*W) over the NCHW flatten; permute its
    # columns into the kernel's (h, w, c) feature order and split by feature row.
    wfc = jnp.transpose(tp['fc_w'].reshape(n_classes, D2, Hp2, Wp2),
                        (2, 3, 1, 0)).reshape(Hp2, Wp2 * D2, n_classes)
    return dict(
        m1=jnp.asarray(_build_im2col_conv_matrix(tp['conv1_w'], W1), jnp.bfloat16),
        m2=jnp.asarray(_build_im2col_conv_matrix(tp['conv2_w'], W2), jnp.bfloat16),
        s1=s1, sh1=sh1, s2=s2, sh2=sh2,
        wfc=wfc.astype(jnp.bfloat16),
        bfc=tp['fc_b'].reshape(1, n_classes).astype(jnp.float32),
    )


# ------------------------------ forward pass ----------------------------------

def net_conv2d_forward(x_nchw, kp, hp, *, max_batch_tile=8):
    """Fused NetConv2D forward (eval mode: Dropout layers are identity)."""
    N, C_in, H1, W1 = x_nchw.shape
    D1, D2 = hp['conv1_ch_out'], hp['conv2_ch_out']
    # TODO(synk): only this configuration is fused (3x3 convs, stride 1,
    # padding 1, 2x2/2 pools, multi_block=True).
    assert hp['multi_block']
    assert hp['conv1_kernel_size'] == hp['conv2_kernel_size'] == 3
    assert hp['conv1_stride'] == hp['conv2_stride'] == 1
    assert hp['conv1_padding'] == hp['conv2_padding'] == 1
    assert (hp['pool1_kernel_size'], hp['pool1_stride'], hp['pool1_padding']) == (2, 2, 0)
    assert (hp['pool2_kernel_size'], hp['pool2_stride'], hp['pool2_padding']) == (2, 2, 0)
    assert H1 % 4 == 0 and W1 % 4 == 0 and H1 >= 8 and W1 >= 8

    W2, H2 = W1 // 2, H1 // 2
    Hp2, Wp2 = H1 // 4, W1 // 4
    T1 = H1 // 4
    K1, K2 = 3 * W1 * C_in, 3 * W2 * D1
    n_classes = kp['bfc'].shape[-1]

    # Batch tiling: stack images along the matmul M dimension, but keep >= 2
    # grid steps when N >= 2 so both v7x TensorCores get work ("parallel" axis).
    B_tile = 1 if N <= 1 else max(1, min(max_batch_tile, -(-N // 2)))
    num_tiles = -(-N // B_tile)
    Npad = num_tiles * B_tile

    taps = _prep_input(x_nchw, Npad)               # (Npad, H1, K1) bf16

    kernel = functools.partial(_net_fused_kernel, T1=T1,
                               half1=(W1 // 2) * D1, half2=(W2 // 2) * D2)

    flops = 2 * Npad * (H1 * W1 * 9 * C_in * D1 + H2 * W2 * 9 * D1 * D2
                        + Hp2 * Wp2 * D2 * n_classes)
    bytes_accessed = (taps.size * 2 + kp['m1'].size * 2 + kp['m2'].size * 2
                      + kp['wfc'].size * 2
                      + 4 * (kp['s1'].size + kp['sh1'].size + kp['s2'].size
                             + kp['sh2'].size + kp['bfc'].size)
                      + 4 * Npad * n_classes)

    out = pl.pallas_call(
        kernel,
        out_shape=jax.ShapeDtypeStruct((num_tiles, B_tile, n_classes), jnp.float32),
        grid=(num_tiles,),
        in_specs=[
            pl.BlockSpec((B_tile, H1, K1), lambda i: (i, 0, 0)),
            # constant index_maps -> weights stay VMEM-resident across the grid
            pl.BlockSpec((K1, W1 * D1), lambda i: (0, 0)),
            pl.BlockSpec((1, W1 * D1), lambda i: (0, 0)),
            pl.BlockSpec((1, W1 * D1), lambda i: (0, 0)),
            pl.BlockSpec((K2, W2 * D2), lambda i: (0, 0)),
            pl.BlockSpec((1, W2 * D2), lambda i: (0, 0)),
            pl.BlockSpec((1, W2 * D2), lambda i: (0, 0)),
            pl.BlockSpec((Hp2, Wp2 * D2, n_classes), lambda i: (0, 0, 0)),
            pl.BlockSpec((1, n_classes), lambda i: (0, 0)),
        ],
        out_specs=pl.BlockSpec((1, B_tile, n_classes), lambda i: (i, 0, 0)),
        compiler_params=pltpu.CompilerParams(
            dimension_semantics=("parallel",),         # batch tiles -> megacore
            vmem_limit_bytes=32 * 1024 * 1024),        # explicit, fits v5e/v6e/v7x
        cost_estimate=pl.CostEstimate(flops=flops,
                                      transcendentals=Npad * n_classes,
                                      bytes_accessed=bytes_accessed),
    )(taps, kp['m1'], kp['s1'], kp['sh1'], kp['m2'], kp['s2'], kp['sh2'],
      kp['wfc'], kp['bfc'])
    return out.reshape(Npad, n_classes)[:N]


# -------------------- synthetic PyTorch-layout parameters ---------------------

def init_torch_params(key, hp, n_classes, H1, W1):
    c_in, D1, D2 = hp['conv1_ch_in'], hp['conv1_ch_out'], hp['conv2_ch_out']
    Hp2, Wp2 = H1 // 4, W1 // 4
    ks = jax.random.split(key, 14)
    return dict(
        conv1_w=0.1 * jax.random.normal(ks[0], (D1, c_in, 3, 3), jnp.float32),
        conv1_b=0.1 * jax.random.normal(ks[1], (D1,), jnp.float32),
        bn1_gamma=1.0 + 0.1 * jax.random.normal(ks[2], (D1,), jnp.float32),
        bn1_beta=0.1 * jax.random.normal(ks[3], (D1,), jnp.float32),
        bn1_mean=0.1 * jax.random.normal(ks[4], (D1,), jnp.float32),
        bn1_var=jax.random.uniform(ks[5], (D1,), jnp.float32, 0.5, 1.5),
        conv2_w=0.1 * jax.random.normal(ks[6], (D2, D1, 3, 3), jnp.float32),
        conv2_b=0.1 * jax.random.normal(ks[7], (D2,), jnp.float32),
        bn2_gamma=1.0 + 0.1 * jax.random.normal(ks[8], (D2,), jnp.float32),
        bn2_beta=0.1 * jax.random.normal(ks[9], (D2,), jnp.float32),
        bn2_mean=0.1 * jax.random.normal(ks[10], (D2,), jnp.float32),
        bn2_var=jax.random.uniform(ks[11], (D2,), jnp.float32, 0.5, 1.5),
        fc_w=0.1 * jax.random.normal(ks[12], (n_classes, D2 * Hp2 * Wp2), jnp.float32),
        fc_b=0.1 * jax.random.normal(ks[13], (n_classes,), jnp.float32),
    )


# ------------------------- pure-JAX reference (NCHW) ---------------------------

def reference_forward(x_nchw, tp, eps=1e-5):
    """PyTorch-semantics reference (eval mode) for numerical validation."""
    def block(x, w, b, g, beta, mean, var):
        y = lax.conv_general_dilated(
            x, w, window_strides=(1, 1), padding=((1, 1), (1, 1)),
            dimension_numbers=('NCHW', 'OIHW', 'NCHW'),
            precision=lax.Precision.HIGHEST)
        y = y + b[None, :, None, None]
        y = ((y - mean[None, :, None, None])
             / jnp.sqrt(var[None, :, None, None] + eps)
             * g[None, :, None, None] + beta[None, :, None, None])
        y = jnp.maximum(y, 0.0)
        return lax.reduce_window(y, -jnp.inf, lax.max,
                                 (1, 1, 2, 2), (1, 1, 2, 2), 'VALID')

    y = block(x_nchw, tp['conv1_w'], tp['conv1_b'], tp['bn1_gamma'],
              tp['bn1_beta'], tp['bn1_mean'], tp['bn1_var'])
    y = block(y, tp['conv2_w'], tp['conv2_b'], tp['bn2_gamma'],
              tp['bn2_beta'], tp['bn2_mean'], tp['bn2_var'])
    flat = y.reshape(y.shape[0], -1)                         # NCHW flatten
    logits = jnp.dot(flat, tp['fc_w'].T, precision=lax.Precision.HIGHEST) + tp['fc_b']
    return jax.nn.softmax(logits, axis=1)


if __name__ == "__main__":
    HP = dict(
        multi_block=True,
        conv1_ch_in=1, conv1_ch_out=8, conv1_kernel_size=3, conv1_stride=1, conv1_padding=1,
        pool1_kernel_size=2, pool1_stride=2, pool1_padding=0,
        conv2_ch_out=16, conv2_kernel_size=3, conv2_stride=1, conv2_padding=1,
        pool2_kernel_size=2, pool2_stride=2, pool2_padding=0,
    )
    batch_size, n_timesteps, n_freq, n_classes = 2, 16, 16, 4

    key = jax.random.PRNGKey(0)
    k_par, k_x = jax.random.split(key)
    torch_params = init_torch_params(k_par, HP, n_classes, n_timesteps, n_freq)
    kparams = pack_params(torch_params, HP, n_timesteps, n_freq, n_classes)
    x = jax.random.normal(
        k_x, (batch_size, HP['conv1_ch_in'], n_timesteps, n_freq), jnp.float32)

    fwd = jax.jit(lambda xx: net_conv2d_forward(xx, kparams, HP))
    out = jax.block_until_ready(fwd(x))

    assert out.shape == (batch_size, n_classes), out.shape
    assert bool(jnp.all(jnp.abs(jnp.sum(out, axis=1) - 1.0) < 1e-5))

    ref = jax.block_until_ready(reference_forward(x, torch_params))
    max_err = float(jnp.max(jnp.abs(out - ref)))
    # bf16 MXU operands (f32 accumulation / BN / softmax) -> slightly wider
    # tolerance than a pure-f32 kernel would need.
    assert max_err < 1.5e-2, f"mismatch vs PyTorch-semantics reference: {max_err}"
    # TODO(synk): Dropout(0.2) layers are identity (eval mode); BatchNorm2d uses
    # folded running statistics (inference mode); multi_block=False is not fused.
    print("KERNEL_OK")
</pallas_src>

<mosaic_0001>
module attributes {stable_mosaic.version = 11 : i64} {
  func.func @_net_fused_kernel(%arg0: i32, %arg1: memref<1x16x48xbf16, #tpu.memory_space<vmem>>, %arg2: memref<48x128xbf16, #tpu.memory_space<vmem>>, %arg3: memref<1x128xf32, #tpu.memory_space<vmem>>, %arg4: memref<1x128xf32, #tpu.memory_space<vmem>>, %arg5: memref<192x128xbf16, #tpu.memory_space<vmem>>, %arg6: memref<1x128xf32, #tpu.memory_space<vmem>>, %arg7: memref<1x128xf32, #tpu.memory_space<vmem>>, %arg8: memref<4x64x4xbf16, #tpu.memory_space<vmem>>, %arg9: memref<1x4xf32, #tpu.memory_space<vmem>>, %arg10: memref<1x1x4xf32, #tpu.memory_space<vmem>>) attributes {dimension_semantics = [#tpu.dimension_semantics<parallel>], iteration_bounds = array<i64: 2>, scalar_prefetch = 0 : i64, scratch_operands = 0 : i64, tpu.core_type = #tpu.core_type<tc>, window_params = [{transform_indices = @transform_0, window_bounds = array<i64: 1, 16, 48>}, {pipeline_mode = #tpu.pipeline_mode<synchronous>, transform_indices = @transform_1, window_bounds = array<i64: 48, 128>}, {pipeline_mode = #tpu.pipeline_mode<synchronous>, transform_indices = @transform_2, window_bounds = array<i64: 1, 128>}, {pipeline_mode = #tpu.pipeline_mode<synchronous>, transform_indices = @transform_3, window_bounds = array<i64: 1, 128>}, {pipeline_mode = #tpu.pipeline_mode<synchronous>, transform_indices = @transform_4, window_bounds = array<i64: 192, 128>}, {pipeline_mode = #tpu.pipeline_mode<synchronous>, transform_indices = @transform_5, window_bounds = array<i64: 1, 128>}, {pipeline_mode = #tpu.pipeline_mode<synchronous>, transform_indices = @transform_6, window_bounds = array<i64: 1, 128>}, {pipeline_mode = #tpu.pipeline_mode<synchronous>, transform_indices = @transform_7, window_bounds = array<i64: 4, 64, 4>}, {pipeline_mode = #tpu.pipeline_mode<synchronous>, transform_indices = @transform_8, window_bounds = array<i64: 1, 4>}, {transform_indices = @transform_9, window_bounds = array<i64: 1, 1, 4>}]} {
    %c0 = arith.constant 0 : index
    %c0_0 = arith.constant 0 : index
    %c0_1 = arith.constant 0 : index
    %0 = vector.load %arg1[%c0, %c0_0, %c0_1] : memref<1x16x48xbf16, #tpu.memory_space<vmem>>, vector<1x16x48xbf16>
    %1 = vector.shape_cast %0 : vector<1x16x48xbf16> to vector<16x48xbf16>
    %c0_2 = arith.constant 0 : index
    %c0_3 = arith.constant 0 : index
    %2 = vector.load %arg2[%c0_2, %c0_3] : memref<48x128xbf16, #tpu.memory_space<vmem>>, vector<48x128xbf16>
    %cst = arith.constant dense<0.000000e+00> : vector<16x128xf32>
    %3 = tpu.matmul %1, %2, %cst {dimension_numbers = #tpu.dot_dimension_numbers<[1], [0], [0], [1], [0, 0, 1, 1], [], []>} : vector<16x48xbf16>, vector<48x128xbf16>, vector<16x128xf32> -> vector<16x128xf32>
    %4 = vector.shape_cast %3 : vector<16x128xf32> to vector<1x16x128xf32>
    %c0_4 = arith.constant 0 : index
    %c0_5 = arith.constant 0 : index
    %5 = vector.load %arg3[%c0_4, %c0_5] : memref<1x128xf32, #tpu.memory_space<vmem>>, vector<1x128xf32>
    %6 = vector.shape_cast %5 : vector<1x128xf32> to vector<1x1x128xf32>
    %7 = vector.broadcast %6 : vector<1x1x128xf32> to vector<1x16x128xf32>
    %8 = arith.mulf %4, %7 : vector<1x16x128xf32>
    %c0_6 = arith.constant 0 : index
    %c0_7 = arith.constant 0 : index
    %9 = vector.load %arg4[%c0_6, %c0_7] : memref<1x128xf32, #tpu.memory_space<vmem>>, vector<1x128xf32>
    %10 = vector.shape_cast %9 : vector<1x128xf32> to vector<1x1x128xf32>
    %11 = vector.broadcast %10 : vector<1x1x128xf32> to vector<1x16x128xf32>
    %12 = arith.addf %8, %11 : vector<1x16x128xf32>
    %cst_8 = arith.constant 0.000000e+00 : f32
    %13 = vector.broadcast %cst_8 : f32 to vector<1x16x128xf32>
    %14 = arith.maximumf %12, %13 : vector<1x16x128xf32>
    %15 = vector.extract_strided_slice %14 {offsets = [0, 0, 0], sizes = [1, 16, 64], strides = [1, 1, 1]} : vector<1x16x128xf32> to vector<1x16x64xf32>
    %16 = vector.extract_strided_slice %14 {offsets = [0, 0, 64], sizes = [1, 16, 64], strides = [1, 1, 1]} : vector<1x16x128xf32> to vector<1x16x64xf32>
    %17 = arith.maximumf %15, %16 : vector<1x16x64xf32>
    %18 = vector.extract_strided_slice %17 {offsets = [0, 0, 0], sizes = [1, 8, 64], strides = [1, 1, 1]} : vector<1x16x64xf32> to vector<1x8x64xf32>
    %19 = vector.extract_strided_slice %17 {offsets = [0, 8, 0], sizes = [1, 8, 64], strides = [1, 1, 1]} : vector<1x16x64xf32> to vector<1x8x64xf32>
    %20 = arith.maximumf %18, %19 : vector<1x8x64xf32>
    %21 = vector.extract_strided_slice %20 {offsets = [0, 0, 0], sizes = [1, 4, 64], strides = [1, 1, 1]} : vector<1x8x64xf32> to vector<1x4x64xf32>
    %22 = vector.extract_strided_slice %20 {offsets = [0, 4, 0], sizes = [1, 4, 64], strides = [1, 1, 1]} : vector<1x8x64xf32> to vector<1x4x64xf32>
    %cst_9 = arith.constant 0.000000e+00 : f32
    %23 = vector.broadcast %cst_9 : f32 to vector<1x1x64xf32>
    %24 = vector.extract_strided_slice %22 {offsets = [0, 0, 0], sizes = [1, 3, 64], strides = [1, 1, 1]} : vector<1x4x64xf32> to vector<1x3x64xf32>
    %25 = tpu.concatenate %23, %24 in 1 : vector<1x1x64xf32>, vector<1x3x64xf32> -> vector<1x4x64xf32>
    %26 = vector.extract_strided_slice %21 {offsets = [0, 1, 0], sizes = [1, 3, 64], strides = [1, 1, 1]} : vector<1x4x64xf32> to vector<1x3x64xf32>
    %27 = tpu.concatenate %26, %23 in 1 : vector<1x3x64xf32>, vector<1x1x64xf32> -> vector<1x4x64xf32>
    %28 = tpu.concatenate %25, %21, %22 in 2 : vector<1x4x64xf32>, vector<1x4x64xf32>, vector<1x4x64xf32> -> vector<1x4x192xf32>
    %29 = tpu.concatenate %21, %22, %27 in 2 : vector<1x4x64xf32>, vector<1x4x64xf32>, vector<1x4x64xf32> -> vector<1x4x192xf32>
    %30 = tpu.concatenate %28, %29 in 1 : vector<1x4x192xf32>, vector<1x4x192xf32> -> vector<1x8x192xf32>
    %31 = vector.shape_cast %30 : vector<1x8x192xf32> to vector<8x192xf32>
    %32 = arith.truncf %31 : vector<8x192xf32> to vector<8x192xbf16>
    %c0_10 = arith.constant 0 : index
    %c0_11 = arith.constant 0 : index
    %33 = vector.load %arg5[%c0_10, %c0_11] : memref<192x128xbf16, #tpu.memory_space<vmem>>, vector<192x128xbf16>
    %cst_12 = arith.constant dense<0.000000e+00> : vector<8x128xf32>
    %34 = tpu.matmul %32, %33, %cst_12 {dimension_numbers = #tpu.dot_dimension_numbers<[1], [0], [0], [1], [0, 0, 1, 1], [], []>} : vector<8x192xbf16>, vector<192x128xbf16>, vector<8x128xf32> -> vector<8x128xf32>
    %35 = vector.shape_cast %34 : vector<8x128xf32> to vector<1x8x128xf32>
    %c0_13 = arith.constant 0 : index
    %c0_14 = arith.constant 0 : index
    %36 = vector.load %arg6[%c0_13, %c0_14] : memref<1x128xf32, #tpu.memory_space<vmem>>, vector<1x128xf32>
    %37 = vector.shape_cast %36 : vector<1x128xf32> to vector<1x1x128xf32>
    %38 = vector.broadcast %37 : vector<1x1x128xf32> to vector<1x8x128xf32>
    %39 = arith.mulf %35, %38 : vector<1x8x128xf32>
    %c0_15 = arith.constant 0 : index
    %c0_16 = arith.constant 0 : index
    %40 = vector.load %arg7[%c0_15, %c0_16] : memref<1x128xf32, #tpu.memory_space<vmem>>, vector<1x128xf32>
    %41 = vector.shape_cast %40 : vector<1x128xf32> to vector<1x1x128xf32>
    %42 = vector.broadcast %41 : vector<1x1x128xf32> to vector<1x8x128xf32>
    %43 = arith.addf %39, %42 : vector<1x8x128xf32>
    %cst_17 = arith.constant 0.000000e+00 : f32
    %44 = vector.broadcast %cst_17 : f32 to vector<1x8x128xf32>
    %45 = arith.maximumf %43, %44 : vector<1x8x128xf32>
    %46 = vector.extract_strided_slice %45 {offsets = [0, 0, 0], sizes = [1, 8, 64], strides = [1, 1, 1]} : vector<1x8x128xf32> to vector<1x8x64xf32>
    %47 = vector.extract_strided_slice %45 {offsets = [0, 0, 64], sizes = [1, 8, 64], strides = [1, 1, 1]} : vector<1x8x128xf32> to vector<1x8x64xf32>
    %48 = arith.maximumf %46, %47 : vector<1x8x64xf32>
    %49 = vector.extract_strided_slice %48 {offsets = [0, 0, 0], sizes = [1, 4, 64], strides = [1, 1, 1]} : vector<1x8x64xf32> to vector<1x4x64xf32>
    %50 = vector.extract_strided_slice %48 {offsets = [0, 4, 0], sizes = [1, 4, 64], strides = [1, 1, 1]} : vector<1x8x64xf32> to vector<1x4x64xf32>
    %51 = arith.maximumf %49, %50 : vector<1x4x64xf32>
    %52 = arith.truncf %51 : vector<1x4x64xf32> to vector<1x4x64xbf16>
    %53 = vector.extract_strided_slice %52 {offsets = [0, 0, 0], sizes = [1, 1, 64], strides = [1, 1, 1]} : vector<1x4x64xbf16> to vector<1x1x64xbf16>
    %54 = vector.shape_cast %53 : vector<1x1x64xbf16> to vector<1x64xbf16>
    %c0_18 = arith.constant 0 : index
    %c0_19 = arith.constant 0 : index
    %c0_20 = arith.constant 0 : index
    %55 = vector.load %arg8[%c0_18, %c0_19, %c0_20] : memref<4x64x4xbf16, #tpu.memory_space<vmem>>, vector<1x64x4xbf16>
    %56 = vector.shape_cast %55 : vector<1x64x4xbf16> to vector<64x4xbf16>
    %cst_21 = arith.constant dense<0.000000e+00> : vector<1x4xf32>
    %57 = tpu.matmul %54, %56, %cst_21 {dimension_numbers = #tpu.dot_dimension_numbers<[1], [0], [0], [1], [0, 0, 1, 1], [], []>} : vector<1x64xbf16>, vector<64x4xbf16>, vector<1x4xf32> -> vector<1x4xf32>
    %58 = vector.extract_strided_slice %52 {offsets = [0, 1, 0], sizes = [1, 1, 64], strides = [1, 1, 1]} : vector<1x4x64xbf16> to vector<1x1x64xbf16>
    %59 = vector.shape_cast %58 : vector<1x1x64xbf16> to vector<1x64xbf16>
    %c1 = arith.constant 1 : index
    %c0_22 = arith.constant 0 : index
    %c0_23 = arith.constant 0 : index
    %60 = vector.load %arg8[%c1, %c0_22, %c0_23] : memref<4x64x4xbf16, #tpu.memory_space<vmem>>, vector<1x64x4xbf16>
    %61 = vector.shape_cast %60 : vector<1x64x4xbf16> to vector<64x4xbf16>
    %cst_24 = arith.constant dense<0.000000e+00> : vector<1x4xf32>
    %62 = tpu.matmul %59, %61, %cst_24 {dimension_numbers = #tpu.dot_dimension_numbers<[1], [0], [0], [1], [0, 0, 1, 1], [], []>} : vector<1x64xbf16>, vector<64x4xbf16>, vector<1x4xf32> -> vector<1x4xf32>
    %63 = vector.extract_strided_slice %52 {offsets = [0, 2, 0], sizes = [1, 1, 64], strides = [1, 1, 1]} : vector<1x4x64xbf16> to vector<1x1x64xbf16>
    %64 = vector.shape_cast %63 : vector<1x1x64xbf16> to vector<1x64xbf16>
    %c2 = arith.constant 2 : index
    %c0_25 = arith.constant 0 : index
    %c0_26 = arith.constant 0 : index
    %65 = vector.load %arg8[%c2, %c0_25, %c0_26] : memref<4x64x4xbf16, #tpu.memory_space<vmem>>, vector<1x64x4xbf16>
    %66 = vector.shape_cast %65 : vector<1x64x4xbf16> to vector<64x4xbf16>
    %cst_27 = arith.constant dense<0.000000e+00> : vector<1x4xf32>
    %67 = tpu.matmul %64, %66, %cst_27 {dimension_numbers = #tpu.dot_dimension_numbers<[1], [0], [0], [1], [0, 0, 1, 1], [], []>} : vector<1x64xbf16>, vector<64x4xbf16>, vector<1x4xf32> -> vector<1x4xf32>
    %68 = vector.extract_strided_slice %52 {offsets = [0, 3, 0], sizes = [1, 1, 64], strides = [1, 1, 1]} : vector<1x4x64xbf16> to vector<1x1x64xbf16>
    %69 = vector.shape_cast %68 : vector<1x1x64xbf16> to vector<1x64xbf16>
    %c3 = arith.constant 3 : index
    %c0_28 = arith.constant 0 : index
    %c0_29 = arith.constant 0 : index
    %70 = vector.load %arg8[%c3, %c0_28, %c0_29] : memref<4x64x4xbf16, #tpu.memory_space<vmem>>, vector<1x64x4xbf16>
    %71 = vector.shape_cast %70 : vector<1x64x4xbf16> to vector<64x4xbf16>
    %cst_30 = arith.constant dense<0.000000e+00> : vector<1x4xf32>
    %72 = tpu.matmul %69, %71, %cst_30 {dimension_numbers = #tpu.dot_dimension_numbers<[1], [0], [0], [1], [0, 0, 1, 1], [], []>} : vector<1x64xbf16>, vector<64x4xbf16>, vector<1x4xf32> -> vector<1x4xf32>
    %73 = arith.addf %57, %62 : vector<1x4xf32>
    %74 = arith.addf %67, %72 : vector<1x4xf32>
    %75 = arith.addf %73, %74 : vector<1x4xf32>
    %c0_31 = arith.constant 0 : index
    %c0_32 = arith.constant 0 : index
    %76 = vector.load %arg9[%c0_31, %c0_32] : memref<1x4xf32, #tpu.memory_space<vmem>>, vector<1x4xf32>
    %77 = arith.addf %76, %75 : vector<1x4xf32>
    %cst_33 = arith.constant dense<0xFF800000> : vector<1xf32>
    %78 = vector.multi_reduction <maximumf>, %77, %cst_33 [1] : vector<1x4xf32> to vector<1xf32>
    %79 = vector.shape_cast %78 : vector<1xf32> to vector<1x1xf32>
    %80 = vector.broadcast %79 : vector<1x1xf32> to vector<1x4xf32>
    %81 = arith.subf %77, %80 : vector<1x4xf32>
    %82 = math.exp %81 : vector<1x4xf32>
    %cst_34 = arith.constant dense<0.000000e+00> : vector<1xf32>
    %83 = vector.multi_reduction <add>, %82, %cst_34 [1] : vector<1x4xf32> to vector<1xf32>
    %84 = vector.shape_cast %83 : vector<1xf32> to vector<1x1xf32>
    %85 = tpu.reciprocal %84 : vector<1x1xf32> -> vector<1x1xf32>
    %86 = vector.broadcast %85 : vector<1x1xf32> to vector<1x4xf32>
    %87 = arith.mulf %82, %86 : vector<1x4xf32>
    %c0_35 = arith.constant 0 : index
    %c0_36 = arith.constant 0 : index
    %c0_37 = arith.constant 0 : index
    %88 = vector.load %arg10[%c0_35, %c0_36, %c0_37] : memref<1x1x4xf32, #tpu.memory_space<vmem>>, vector<1x1x4xf32>
    %89 = vector.shape_cast %88 : vector<1x1x4xf32> to vector<1x4xf32>
    %90 = vector.shape_cast %87 : vector<1x4xf32> to vector<1x1x4xf32>
    tpu.vector_store %arg10[%c0_35, %c0_36, %c0_37], %90 {strides = array<i32>} : memref<1x1x4xf32, #tpu.memory_space<vmem>>, vector<1x1x4xf32>,
    return
  }
  func.func @transform_0(%arg0: i32) -> (i32, i32, i32) {
    %c0_i32 = arith.constant 0 : i32
    %c0_i32_0 = arith.constant 0 : i32
    %c0_i32_1 = arith.constant 0 : i32
    return %arg0, %c0_i32, %c0_i32_0 : i32, i32, i32
  }
  func.func @transform_1(%arg0: i32) -> (i32, i32) {
    %c0_i32 = arith.constant 0 : i32
    %c0_i32_0 = arith.constant 0 : i32
    %c0_i32_1 = arith.constant 0 : i32
    return %c0_i32, %c0_i32_0 : i32, i32
  }
  func.func @transform_2(%arg0: i32) -> (i32, i32) {
    %c0_i32 = arith.constant 0 : i32
    %c0_i32_0 = arith.constant 0 : i32
    %c0_i32_1 = arith.constant 0 : i32
    return %c0_i32, %c0_i32_0 : i32, i32
  }
  func.func @transform_3(%arg0: i32) -> (i32, i32) {
    %c0_i32 = arith.constant 0 : i32
    %c0_i32_0 = arith.constant 0 : i32
    %c0_i32_1 = arith.constant 0 : i32
    return %c0_i32, %c0_i32_0 : i32, i32
  }
  func.func @transform_4(%arg0: i32) -> (i32, i32) {
    %c0_i32 = arith.constant 0 : i32
    %c0_i32_0 = arith.constant 0 : i32
    %c0_i32_1 = arith.constant 0 : i32
    return %c0_i32, %c0_i32_0 : i32, i32
  }
  func.func @transform_5(%arg0: i32) -> (i32, i32) {
    %c0_i32 = arith.constant 0 : i32
    %c0_i32_0 = arith.constant 0 : i32
    %c0_i32_1 = arith.constant 0 : i32
    return %c0_i32, %c0_i32_0 : i32, i32
  }
  func.func @transform_6(%arg0: i32) -> (i32, i32) {
    %c0_i32 = arith.constant 0 : i32
    %c0_i32_0 = arith.constant 0 : i32
    %c0_i32_1 = arith.constant 0 : i32
    return %c0_i32, %c0_i32_0 : i32, i32
  }
  func.func @transform_7(%arg0: i32) -> (i32, i32, i32) {
    %c0_i32 = arith.constant 0 : i32
    %c0_i32_0 = arith.constant 0 : i32
    %c0_i32_1 = arith.constant 0 : i32
    %c0_i32_2 = arith.constant 0 : i32
    return %c0_i32, %c0_i32_0, %c0_i32_1 : i32, i32, i32
  }
  func.func @transform_8(%arg0: i32) -> (i32, i32) {
    %c0_i32 = arith.constant 0 : i32
    %c0_i32_0 = arith.constant 0 : i32
    %c0_i32_1 = arith.constant 0 : i32
    return %c0_i32, %c0_i32_0 : i32, i32
  }
  func.func @transform_9(%arg0: i32) -> (i32, i32, i32) {
    %c0_i32 = arith.constant 0 : i32
    %c0_i32_0 = arith.constant 0 : i32
    %c0_i32_1 = arith.constant 0 : i32
    return %arg0, %c0_i32, %c0_i32_0 : i32, i32, i32
  }
}

</mosaic_0001>

<llo_original>
// kernel: _lambda_.1
$region0: #{_lambda_.1}
  #allocation0 [shape = 'u32[]', space=smem, size = 0x4, offset = 0x4, fixed_abs, tag = 'smem constant byte address 0x4 - core index']
  #allocation1 [shape = 'u32[144,128]{1,0:T(1,128)}', space=vmem, size = 0x12000, scoped, tag = 'internal scratch']
  %s0 = inlined_call_operand.vmem [shape: bf16[2,16,48], index: 0, kind: input, shape index: {}]
  %s1 = inlined_call_operand.vmem [shape: bf16[48,128], index: 1, kind: input, shape index: {}]
  %s2 = inlined_call_operand.vmem [shape: f32[1,128], index: 2, kind: input, shape index: {}]
  %s3 = inlined_call_operand.vmem [shape: f32[1,128], index: 3, kind: input, shape index: {}]
  %s4 = inlined_call_operand.vmem [shape: bf16[192,128], index: 4, kind: input, shape index: {}]
  %s5 = inlined_call_operand.vmem [shape: f32[1,128], index: 5, kind: input, shape index: {}]
  %s6 = inlined_call_operand.vmem [shape: f32[1,128], index: 6, kind: input, shape index: {}]
  %s7 = inlined_call_operand.vmem [shape: bf16[4,64,4], index: 7, kind: input, shape index: {}]
  %s8 = inlined_call_operand.vmem [shape: f32[1,4], index: 8, kind: input, shape index: {}]
  %s9 = inlined_call_operand.hbm [shape: f32[2,1,4], index: 9, kind: output, shape index: {}]
  %s10 = sld [smem:[#allocation0]]
  $region69: #{_lambda_.1} parent=0
    _
  %s12 = ssub.s32 1, %s10
  %s13 = scalar_select 0, %s12, %s10
  $region1: #{_lambda_.1} parent=0
    #allocation2 [shape = 'u8[1024]{0}', space=vmem, size = 0x400, scoped, tag = 'output window, operand 0']
    #allocation3 [shape = 's32[2]{0}', space=sflag, size = 0x8, scoped, tag = 'scoped memory for _lambda_.1']
    %14 = vsyncpa [#allocation3], 0
    %s15 = scalar_lea.sflag [#allocation3], 1
    %16 = vsyncpa %s15, 0
    loop: start=0, step=1, limit=4
    $region2: #{_lambda_.1} parent=1 // loop_pre_header
      _
    $region3: #{_lambda_.1} parent=1 // loop_header
      %s18 = sphi 0, %s22
      %p19 = scmp.ge.s32.totalorder %s18, 4
      %s28 = sphi 0, %s30
      %s31 = sphi 0, %s28
      %s32 = sphi 0, %s31
      %s48 = sphi 0, %s32
      %s52 = sphi 0, %s52
      %s54 = sphi 0, %s52
      %s55 = sphi 0, %s54
      %s69 = sphi 0, %s55
      %s73 = sphi 0, %s73
      %s75 = sphi 0, %s73
      %s76 = sphi 0, %s75
      %s90 = sphi 0, %s76
      %s94 = sphi 0, %s94
      %s96 = sphi 0, %s94
      %s97 = sphi 0, %s96
      %s111 = sphi 0, %s97
      %s115 = sphi 0, %s115
      %s117 = sphi 0, %s115
      %s118 = sphi 0, %s117
      %s132 = sphi 0, %s118
      %s136 = sphi 0, %s136
      %s138 = sphi 0, %s136
      %s139 = sphi 0, %s138
      %s153 = sphi 0, %s139
      %s157 = sphi 0, %s157
      %s159 = sphi 0, %s157
      %s160 = sphi 0, %s159
      %s174 = sphi 0, %s160
      %s178 = sphi 0, %s178
      %s180 = sphi 0, %s178
      %s181 = sphi 0, %s180
      %s195 = sphi 0, %s181
      %s199 = sphi 0, %s199
      %s201 = sphi 0, %s199
      %s202 = sphi 0, %s201
      %s216 = sphi 0, %s202
      %s222 = sphi 0, %s224
      %s225 = sphi 0, %s222
      %s226 = sphi 0, %s225
      %s242 = sphi 0, %s226
    $region4: #{_lambda_.1} parent=1 // loop_header_branch
      %21 = sbr.rel (%p19) target = $region8
    $region5: #{_lambda_.1} parent=1 // loop_body
      %s23 = ssub.s32 %s18, 1
      %s24 = ssub.s32 %s18, 2
      %s25 = sadd.s32 %s18, 1
      %s26 = ssub.s32 %s18, %s25
      %p27 = scmp.eq.s32.totalorder %s26, 0
      %s29 = sadd.s32 %s28, 1
      %s30 = scalar_select %p27, %s28, %s29
      %p33 = pneg %p27
      %p34 = scmp.eq.s32.totalorder %s18, 1
      %p35 = por %p33, %p34
      %p36 = scmp.ne.s32.totalorder %s28, %s31
      %p37 = scmp.eq.s32.totalorder %s18, 0
      %p38 = por %p36, %p37
      %p39 = scmp.ne.s32.totalorder %s28, %s31
      %p40 = scmp.eq.s32.totalorder %s23, 1
      %p41 = por %p39, %p40
      %p42 = scmp.ne.s32.totalorder %s31, %s32
      %p43 = scmp.eq.s32.totalorder %s23, 0
      %p44 = por %p42, %p43
      %p45 = scmp.ne.s32.totalorder %s31, %s32
      %p46 = scmp.eq.s32.totalorder %s24, 1
      %p47 = por %p45, %p46
      %p49 = scmp.ne.s32.totalorder %s32, %s48
      %p50 = scmp.eq.s32.totalorder %s24, 0
      %p51 = por %p49, %p50
      %s53 = sadd.s32 %s52, 1
      %p56 = scmp.eq.s32.totalorder %s18, 1
      %p57 = scmp.ne.s32.totalorder %s52, %s54
      %p58 = scmp.eq.s32.totalorder %s18, 0
      %p59 = por %p57, %p58
      %p60 = scmp.ne.s32.totalorder %s52, %s54
      %p61 = scmp.eq.s32.totalorder %s23, 1
      %p62 = por %p60, %p61
      %p63 = scmp.ne.s32.totalorder %s54, %s55
      %p64 = scmp.eq.s32.totalorder %s23, 0
      %p65 = por %p63, %p64
      %p66 = scmp.ne.s32.totalorder %s54, %s55
      %p67 = scmp.eq.s32.totalorder %s24, 1
      %p68 = por %p66, %p67
      %p70 = scmp.ne.s32.totalorder %s55, %s69
      %p71 = scmp.eq.s32.totalorder %s24, 0
      %p72 = por %p70, %p71
      %s74 = sadd.s32 %s73, 1
      %p77 = scmp.eq.s32.totalorder %s18, 1
      %p78 = scmp.ne.s32.totalorder %s73, %s75
      %p79 = scmp.eq.s32.totalorder %s18, 0
      %p80 = por %p78, %p79
      %p81 = scmp.ne.s32.totalorder %s73, %s75
      %p82 = scmp.eq.s32.totalorder %s23, 1
      %p83 = por %p81, %p82
      %p84 = scmp.ne.s32.totalorder %s75, %s76
      %p85 = scmp.eq.s32.totalorder %s23, 0
      %p86 = por %p84, %p85
      %p87 = scmp.ne.s32.totalorder %s75, %s76
      %p88 = scmp.eq.s32.totalorder %s24, 1
      %p89 = por %p87, %p88
      %p91 = scmp.ne.s32.totalorder %s76, %s90
      %p92 = scmp.eq.s32.totalorder %s24, 0
      %p93 = por %p91, %p92
      %s95 = sadd.s32 %s94, 1
      %p98 = scmp.eq.s32.totalorder %s18, 1
      %p99 = scmp.ne.s32.totalorder %s94, %s96
      %p100 = scmp.eq.s32.totalorder %s18, 0
      %p101 = por %p99, %p100
      %p102 = scmp.ne.s32.totalorder %s94, %s96
      %p103 = scmp.eq.s32.totalorder %s23, 1
      %p104 = por %p102, %p103
      %p105 = scmp.ne.s32.totalorder %s96, %s97
      %p106 = scmp.eq.s32.totalorder %s23, 0
      %p107 = por %p105, %p106
      %p108 = scmp.ne.s32.totalorder %s96, %s97
      %p109 = scmp.eq.s32.totalorder %s24, 1
      %p110 = por %p108, %p109
      %p112 = scmp.ne.s32.totalorder %s97, %s111
      %p113 = scmp.eq.s32.totalorder %s24, 0
      %p114 = por %p112, %p113
      %s116 = sadd.s32 %s115, 1
      %p119 = scmp.eq.s32.totalorder %s18, 1
      %p120 = scmp.ne.s32.totalorder %s115, %s117
      %p121 = scmp.eq.s32.totalorder %s18, 0
      %p122 = por %p120, %p121
      %p123 = scmp.ne.s32.totalorder %s115, %s117
      %p124 = scmp.eq.s32.totalorder %s23, 1
      %p125 = por %p123, %p124
      %p126 = scmp.ne.s32.totalorder %s117, %s118
      %p127 = scmp.eq.s32.totalorder %s23, 0
      %p128 = por %p126, %p127
      %p129 = scmp.ne.s32.totalorder %s117, %s118
      %p130 = scmp.eq.s32.totalorder %s24, 1
      %p131 = por %p129, %p130
      %p133 = scmp.ne.s32.totalorder %s118, %s132
      %p134 = scmp.eq.s32.totalorder %s24, 0
      %p135 = por %p133, %p134
      %s137 = sadd.s32 %s136, 1
      %p140 = scmp.eq.s32.totalorder %s18, 1
      %p141 = scmp.ne.s32.totalorder %s136, %s138
      %p142 = scmp.eq.s32.totalorder %s18, 0
      %p143 = por %p141, %p142
      %p144 = scmp.ne.s32.totalorder %s136, %s138
      %p145 = scmp.eq.s32.totalorder %s23, 1
      %p146 = por %p144, %p145
      %p147 = scmp.ne.s32.totalorder %s138, %s139
      %p148 = scmp.eq.s32.totalorder %s23, 0
      %p149 = por %p147, %p148
      %p150 = scmp.ne.s32.totalorder %s138, %s139
      %p151 = scmp.eq.s32.totalorder %s24, 1
      %p152 = por %p150, %p151
      %p154 = scmp.ne.s32.totalorder %s139, %s153
      %p155 = scmp.eq.s32.totalorder %s24, 0
      %p156 = por %p154, %p155
      %s158 = sadd.s32 %s157, 1
      %p161 = scmp.eq.s32.totalorder %s18, 1
      %p162 = scmp.ne.s32.totalorder %s157, %s159
      %p163 = scmp.eq.s32.totalorder %s18, 0
      %p164 = por %p162, %p163
      %p165 = scmp.ne.s32.totalorder %s157, %s159
      %p166 = scmp.eq.s32.totalorder %s23, 1
      %p167 = por %p165, %p166
      %p168 = scmp.ne.s32.totalorder %s159, %s160
      %p169 = scmp.eq.s32.totalorder %s23, 0
      %p170 = por %p168, %p169
      %p171 = scmp.ne.s32.totalorder %s159, %s160
      %p172 = scmp.eq.s32.totalorder %s24, 1
      %p173 = por %p171, %p172
      %p175 = scmp.ne.s32.totalorder %s160, %s174
      %p176 = scmp.eq.s32.totalorder %s24, 0
      %p177 = por %p175, %p176
      %s179 = sadd.s32 %s178, 1
      %p182 = scmp.eq.s32.totalorder %s18, 1
      %p183 = scmp.ne.s32.totalorder %s178, %s180
      %p184 = scmp.eq.s32.totalorder %s18, 0
      %p185 = por %p183, %p184
      %p186 = scmp.ne.s32.totalorder %s178, %s180
      %p187 = scmp.eq.s32.totalorder %s23, 1
      %p188 = por %p186, %p187
      %p189 = scmp.ne.s32.totalorder %s180, %s181
      %p190 = scmp.eq.s32.totalorder %s23, 0
      %p191 = por %p189, %p190
      %p192 = scmp.ne.s32.totalorder %s180, %s181
      %p193 = scmp.eq.s32.totalorder %s24, 1
      %p194 = por %p192, %p193
      %p196 = scmp.ne.s32.totalorder %s181, %s195
      %p197 = scmp.eq.s32.totalorder %s24, 0
      %p198 = por %p196, %p197
      %s200 = sadd.s32 %s199, 1
      %p203 = scmp.eq.s32.totalorder %s18, 1
      %p204 = scmp.ne.s32.totalorder %s199, %s201
      %p205 = scmp.eq.s32.totalorder %s18, 0
      %p206 = por %p204, %p205
      %p207 = scmp.ne.s32.totalorder %s199, %s201
      %p208 = scmp.eq.s32.totalorder %s23, 1
      %p209 = por %p207, %p208
      %p210 = scmp.ne.s32.totalorder %s201, %s202
      %p211 = scmp.eq.s32.totalorder %s23, 0
      %p212 = por %p210, %p211
      %p213 = scmp.ne.s32.totalorder %s201, %s202
      %p214 = scmp.eq.s32.totalorder %s24, 1
      %p215 = por %p213, %p214
      %p217 = scmp.ne.s32.totalorder %s202, %s216
      %p218 = scmp.eq.s32.totalorder %s24, 0
      %p219 = por %p217, %p218
      %s220 = ssub.s32 %s18, %s25
      %p221 = scmp.eq.s32.totalorder %s220, 0
      %s223 = sadd.s32 %s222, 1
      %s224 = scalar_select %p221, %s222, %s223
      %p227 = pneg %p221
      %p228 = scmp.eq.s32.totalorder %s18, 1
      %p229 = por %p227, %p228
      %p230 = scmp.ne.s32.totalorder %s222, %s225
      %p231 = scmp.eq.s32.totalorder %s18, 0
      %p232 = por %p230, %p231
      %p233 = scmp.ne.s32.totalorder %s222, %s225
      %p234 = scmp.eq.s32.totalorder %s23, 1
      %p235 = por %p233, %p234
      %p236 = scmp.ne.s32.totalorder %s225, %s226
      %p237 = scmp.eq.s32.totalorder %s23, 0
      %p238 = por %p236, %p237
      %p239 = scmp.ne.s32.totalorder %s225, %s226
      %p240 = scmp.eq.s32.totalorder %s24, 1
      %p241 = por %p239, %p240
      %p243 = scmp.ne.s32.totalorder %s226, %s242
      %p244 = scmp.eq.s32.totalorder %s24, 0
      %p245 = por %p243, %p244
      %p246 = scmp.le.s32.totalorder 1, %s18
      %p247 = scmp.lt.s32.totalorder %s18, 3
      %p248 = pnand %p246, %p247
      %p249 = pneg %p248
      // Predicated region
      $region9: #{_lambda_.1} parent=5 // pred_check
        _
      $region10: #{_lambda_.1} parent=5 // pred_check_branch
        %251 = sbr.rel (%p248) target = $region12
      $region11: #{_lambda_.1} parent=5 // pred_region
        %s252 = ssub.s32 %s18, 1
        // Predicated region
        $region13: #{_lambda_.1} parent=11 // pred_check
          %p253 = pneg %p65
        $region14: #{_lambda_.1} parent=11 // pred_check_branch
          %255 = sbr.rel (%p253) target = $region16
        $region15: #{_lambda_.1} parent=11 // pred_region
          _
        $region16: #{_lambda_.1} parent=11 // pred_fallthru
          _
        // Predicated region
        $region17: #{_lambda_.1} parent=11 // pred_check
          %p256 = pneg %p86
        $region18: #{_lambda_.1} parent=11 // pred_check_branch
          %258 = sbr.rel (%p256) target = $region20
        $region19: #{_lambda_.1} parent=11 // pred_region
          _
        $region20: #{_lambda_.1} parent=11 // pred_fallthru
          _
        // Predicated region
        $region21: #{_lambda_.1} parent=11 // pred_check
          %p259 = pneg %p107
        $region22: #{_lambda_.1} parent=11 // pred_check_branch
          %261 = sbr.rel (%p259) target = $region24
        $region23: #{_lambda_.1} parent=11 // pred_region
          _
        $region24: #{_lambda_.1} parent=11 // pred_fallthru
          _
        // Predicated region
        $region25: #{_lambda_.1} parent=11 // pred_check
          %p262 = pneg %p128
        $region26: #{_lambda_.1} parent=11 // pred_check_branch
          %264 = sbr.rel (%p262) target = $region28
        $region27: #{_lambda_.1} parent=11 // pred_region
          _
        $region28: #{_lambda_.1} parent=11 // pred_fallthru
          _
        // Predicated region
        $region29: #{_lambda_.1} parent=11 // pred_check
          %p265 = pneg %p149
        $region30: #{_lambda_.1} parent=11 // pred_check_branch
          %267 = sbr.rel (%p265) target = $region32
        $region31: #{_lambda_.1} parent=11 // pred_region
          _
        $region32: #{_lambda_.1} parent=11 // pred_fallthru
          _
        // Predicated region
        $region33: #{_lambda_.1} parent=11 // pred_check
          %p268 = pneg %p170
        $region34: #{_lambda_.1} parent=11 // pred_check_branch
          %270 = sbr.rel (%p268) target = $region36
        $region35: #{_lambda_.1} parent=11 // pred_region
          _
        $region36: #{_lambda_.1} parent=11 // pred_fallthru
          _
        // Predicated region
        $region37: #{_lambda_.1} parent=11 // pred_check
          %p271 = pneg %p191
        $region38: #{_lambda_.1} parent=11 // pred_check_branch
          %273 = sbr.rel (%p271) target = $region40
        $region39: #{_lambda_.1} parent=11 // pred_region
          _
        $region40: #{_lambda_.1} parent=11 // pred_fallthru
          _
        // Predicated region
        $region41: #{_lambda_.1} parent=11 // pred_check
          %p274 = pneg %p212
        $region42: #{_lambda_.1} parent=11 // pred_check_branch
          %276 = sbr.rel (%p274) target = $region44
        $region43: #{_lambda_.1} parent=11 // pred_region
          _
        $region44: #{_lambda_.1} parent=11 // pred_fallthru
          _
      $region12: #{_lambda_.1} parent=5 // pred_fallthru
        _
      %p277 = scmp.lt.s32.totalorder %s18, 2
      // Predicated region
      $region45: #{_lambda_.1} parent=5 // pred_check
        %p278 = pneg %p277
      $region46: #{_lambda_.1} parent=5 // pred_check_branch
        %280 = sbr.rel (%p278) target = $region48
      $region47: #{_lambda_.1} parent=5 // pred_region
        // Predicated region
        $region49: #{_lambda_.1} parent=47 // pred_check
          %p281 = pneg %p38
        $region50: #{_lambda_.1} parent=47 // pred_check_branch
          %283 = sbr.rel (%p281) target = $region52
        $region51: #{_lambda_.1} parent=47 // pred_region
          %p284 = scmp.lt.s32.totalorder %s18, 1
          %s285 = scalar_select %p284, %s18, 1
          %s286 = smul.addr %s285, 2
          %s287 = smul.addr %s286, 4
          %s288 = scalar_lea.vmem %s0, %s287
        $region52: #{_lambda_.1} parent=47 // pred_fallthru
          _
      $region48: #{_lambda_.1} parent=5 // pred_fallthru
        _
      %p289 = scmp.le.s32.totalorder 1, %s18
      %p290 = scmp.lt.s32.totalorder %s18, 3
      %p291 = pnand %p289, %p290
      %p292 = pneg %p291
      // Predicated region
      $region53: #{_lambda_.1} parent=5 // pred_check
        _
      $region54: #{_lambda_.1} parent=5 // pred_check_branch
        %294 = sbr.rel (%p291) target = $region56
      $region55: #{_lambda_.1} parent=5 // pred_region
        %s295 = ssub.s32 %s18, 1
        %p296 = scmp.lt.s32.totalorder %s23, 1
        %s297 = scalar_select %p296, %s23, 1
        %s298 = smul.addr %s297, 2
        %s299 = smul.addr %s298, 4
        %s300 = scalar_lea.vmem %s0, %s299
        %p301 = pneg %p44
        %p302 = pneg %p41
        %p303 = pneg %p65
        %p304 = pneg %p62
        %p305 = pneg %p86
        %p306 = pneg %p83
        %p307 = pneg %p107
        %p308 = pneg %p104
        %p309 = pneg %p128
        %p310 = pneg %p125
        %p311 = pneg %p149
        %p312 = pneg %p146
        %p313 = pneg %p170
        %p314 = pneg %p167
        %p315 = pneg %p191
        %p316 = pneg %p188
        %p317 = pneg %p212
        %p318 = pneg %p209
        %p319 = pneg %p238
        %p320 = pneg %p235
        %s321 = sand.u32 %s225, 1
        %s322 = scalar_lea.sflag [#allocation3], %s321
        %s323 = sand.u32 %s225, 1
        %s324 = scalar_lea.vmem [#allocation2], %s323
        %p325 = scmp.lt.s32.totalorder %s23, 1
        %s326 = scalar_select %p325, %s23, 1
        %s327 = smul.addr %s326, 2
        %s328 = smul.addr %s327, 4
        %s329 = scalar_lea.vmem %s0, %s328
        %v331 = vld [vmem:[%s329] sm:$0xf]
        %v332 = vld [vmem:[%s329 + $0x4] sm:$0xf]
        %v333 = vld [vmem:[%s1] sm:$0xf]
        %v334 = vld [vmem:[%s1 + $0x4] sm:$0xf]
        %v335 = vld [vmem:[%s1 + $0x8] sm:$0xf]
        %v336 = vld [vmem:[%s1 + $0xc] sm:$0xf]
        %v337 = vld [vmem:[%s1 + $0x10] sm:$0xf]
        %v338 = vld [vmem:[%s1 + $0x14] sm:$0xf]
        %v341 = vunpack.c.l.b16 %v331
        %v342 = vunpack.c.l.b16 %v332
        %v343 = vpack.c.b16 %v342, %v341
        %v350 = vunpack.c.l.b16 %v333
        %v351 = vunpack.c.l.b16 %v334
        %v352 = vunpack.c.l.b16 %v335
        %v353 = vunpack.c.l.b16 %v336
        %v354 = vunpack.c.l.b16 %v337
        %v355 = vunpack.c.l.b16 %v338
        %v356 = vpack.c.b16 %v351, %v350
        %v357 = vpack.c.b16 %v353, %v352
        %v358 = vpack.c.b16 %v355, %v354
        %vm362 = vcmask 392192
        %v364 = vsel %vm362, %v343, 0
        %366 = vmatprep.subr.bf16.mxu0 0
        %367 = vmatpush1.bf16.msra.mxu0 %v356
        %368 = vmatprep.subr.bf16.mxu0 0
        %369 = vmatpush1.bf16.msra.mxu0 %v357
        %370 = vmatprep.subr.bf16.mxu0 0
        %371 = vmatpush1.bf16.msra.mxu0 %v358
        %372 = vmatprep.subr.bf16.mxu0 0
        %373 = vmatpush1.bf16.msra.mxu0 0
        %374 = vmatprep.subr.bf16.mxu0 0
        %375 = vmatpush1.bf16.msra.mxu0 0
        %376 = vmatprep.subr.bf16.mxu0 0
        %377 = vmatpush1.bf16.msra.mxu0 0
        %378 = vmatprep.subr.bf16.mxu0 0
        %379 = vmatpush1.bf16.msra.mxu0 0
        %380 = vmatprep.subr.bf16.mxu0 0
        %381 = vmatpush1.bf16.msra.mxu0 0
        %382 = vmatprep.subr.bf16.mxu0 0
        %383 = vmatpush1.bf16.msra.mxu0 0
        %384 = vmatprep.subr.bf16.mxu0 0
        %385 = vmatpush1.bf16.msra.mxu0 0
        %386 = vmatprep.subr.bf16.mxu0 0
        %387 = vmatpush1.bf16.msra.mxu0 0
        %388 = vmatprep.subr.bf16.mxu0 0
        %389 = vmatpush1.bf16.msra.mxu0 0
        %390 = vmatprep.subr.bf16.mxu0 0
        %391 = vmatpush1.bf16.msra.mxu0 0
        %392 = vmatprep.subr.bf16.mxu0 0
        %393 = vmatpush1.bf16.msra.mxu0 0
        %394 = vmatprep.subr.bf16.mxu0 0
        %395 = vmatpush1.bf16.msra.mxu0 0
        %396 = vmatprep.subr.bf16.mxu0 0
        %397 = vmatpush1.bf16.msra.mxu0 0
        %398 = vmatprep.mubr.bf16.mxu0 0
        %399 = vmatmul.mubr.bf16.gmra.mrb[0].mxu0 %v364
        %v400 = vpop.f32.mrb[0].mxu0
        %v401 = vadd.f32 0.0, %v400
        %v402 = vpop.f32.mrb[0].mxu0
        %v403 = vpop.f32.mrb[0].mxu0
        %v404 = vadd.f32 0.0, %v403
        %v405 = vpop.f32.mrb[0].mxu0
        %406 = vdwg.mxu0
        %v407 = vld [vmem:[%s2] sm:$0x1]
        %v409 = vlaneseq
        %v410 = vshrl.u32 %v409, 7
        %v411 = vsub.s32 0, %v410
        %v412 = vrot.slane %v407, %v411
        %v414 = vmul.f32 %v401, %v412
        %v415 = vmul.f32 %v404, %v412
        %v416 = vld [vmem:[%s3] sm:$0x1]
        %v418 = vlaneseq
        %v419 = vshrl.u32 %v418, 7
        %v420 = vsub.s32 0, %v419
        %v421 = vrot.slane %v416, %v420
        %v423 = vadd.f32 %v414, %v421
        %v424 = vadd.f32 %v415, %v421
        %v425 = vmax.f32 %v423, 0.0
        %v426 = vmax.f32 %v424, 0.0
        %429 = vrot.lane.b32.xlu0 %v425, 64
        %v430 = vpop.permute.xlu0 %429
        %431 = vrot.lane.b32.xlu0 %v426, 64
        %v432 = vpop.permute.xlu0 %431
        %v435 = vmax.f32 %v425, %v430
        %v436 = vmax.f32 %v426, %v432
        %v437 = vmax.f32 %v435, %v436
        %v439 = vrot.slane %v437, 3
        %vm441 = vcmask 1040384
        %v442 = vsel %vm441, 0.0, %v439
        %v443 = vrot.slane %v437, 1
        %vm445 = vcmask 1042432
        %v446 = vsel %vm445, %v443, 0.0
        %447 = vrot.lane.b32.xlu0 %v437, 64
        %v448 = vpop.permute.xlu0 %447
        %v450 = vrot.slane %v437, 4
        %vm452 = vcmask 523264
        %v453 = vsel %vm452, %v442, %v448
        %454 = vrot.lane.b32.xlu0 %v450, 64
        %v455 = vpop.permute.xlu0 %454
        %v457 = vsel %vm452, %v437, %v455
        %v460 = vrot.slane %v457, 4
        %v461 = vrot.slane %v446, 4
        %vm464 = vcmask 1043456
        %v465 = vsel %vm464, %v453, %v460
        %v466 = vsel %vm464, %v450, %v461
        %v467 = vpack.c.bf16 %v465, %v465
        %v468 = vpack.c.bf16 %v466, %v466
        %v469 = vld [vmem:[%s4] sm:$0xf]
        %v470 = vld [vmem:[%s4 + $0x4] sm:$0xf]
        %v471 = vld [vmem:[%s4 + $0x8] sm:$0xf]
        %v472 = vld [vmem:[%s4 + $0xc] sm:$0xf]
        %v473 = vld [vmem:[%s4 + $0x10] sm:$0xf]
        %v474 = vld [vmem:[%s4 + $0x14] sm:$0xf]
        %v475 = vld [vmem:[%s4 + $0x18] sm:$0xf]
        %v476 = vld [vmem:[%s4 + $0x1c] sm:$0xf]
        %v477 = vld [vmem:[%s4 + $0x20] sm:$0xf]
        %v478 = vld [vmem:[%s4 + $0x24] sm:$0xf]
        %v479 = vld [vmem:[%s4 + $0x28] sm:$0xf]
        %v480 = vld [vmem:[%s4 + $0x2c] sm:$0xf]
        %v481 = vld [vmem:[%s4 + $0x30] sm:$0xf]
        %v482 = vld [vmem:[%s4 + $0x34] sm:$0xf]
        %v483 = vld [vmem:[%s4 + $0x38] sm:$0xf]
        %v484 = vld [vmem:[%s4 + $0x3c] sm:$0xf]
        %v485 = vld [vmem:[%s4 + $0x40] sm:$0xf]
        %v486 = vld [vmem:[%s4 + $0x44] sm:$0xf]
        %v487 = vld [vmem:[%s4 + $0x48] sm:$0xf]
        %v488 = vld [vmem:[%s4 + $0x4c] sm:$0xf]
        %v489 = vld [vmem:[%s4 + $0x50] sm:$0xf]
        %v490 = vld [vmem:[%s4 + $0x54] sm:$0xf]
        %v491 = vld [vmem:[%s4 + $0x58] sm:$0xf]
        %v492 = vld [vmem:[%s4 + $0x5c] sm:$0xf]
        %v517 = vunpack.c.l.b16 %v469
        %v518 = vunpack.c.l.b16 %v470
        %v519 = vunpack.c.l.b16 %v471
        %v520 = vunpack.c.l.b16 %v472
        %v521 = vunpack.c.l.b16 %v473
        %v522 = vunpack.c.l.b16 %v474
        %v523 = vunpack.c.l.b16 %v475
        %v524 = vunpack.c.l.b16 %v476
        %v525 = vunpack.c.l.b16 %v477
        %v526 = vunpack.c.l.b16 %v478
        %v527 = vunpack.c.l.b16 %v479
        %v528 = vunpack.c.l.b16 %v480
        %v529 = vunpack.c.l.b16 %v481
        %v530 = vunpack.c.l.b16 %v482
        %v531 = vunpack.c.l.b16 %v483
        %v532 = vunpack.c.l.b16 %v484
        %v533 = vunpack.c.l.b16 %v485
        %v534 = vunpack.c.l.b16 %v486
        %v535 = vunpack.c.l.b16 %v487
        %v536 = vunpack.c.l.b16 %v488
        %v537 = vunpack.c.l.b16 %v489
        %v538 = vunpack.c.l.b16 %v490
        %v539 = vunpack.c.l.b16 %v491
        %v540 = vunpack.c.l.b16 %v492
        %v541 = vpack.c.b16 %v518, %v517
        %v542 = vpack.c.b16 %v520, %v519
        %v543 = vpack.c.b16 %v522, %v521
        %v544 = vpack.c.b16 %v524, %v523
        %v545 = vpack.c.b16 %v526, %v525
        %v546 = vpack.c.b16 %v528, %v527
        %v547 = vpack.c.b16 %v530, %v529
        %v548 = vpack.c.b16 %v532, %v531
        %v549 = vpack.c.b16 %v534, %v533
        %v550 = vpack.c.b16 %v536, %v535
        %v551 = vpack.c.b16 %v538, %v537
        %v552 = vpack.c.b16 %v540, %v539
        %v566 = vsel %vm452, %v468, 0
        %568 = vmatprep.subr.bf16.mxu0 0
        %569 = vmatpush1.bf16.msra.mxu0 %v541
        %570 = vmatprep.subr.bf16.mxu0 0
        %571 = vmatpush1.bf16.msra.mxu0 %v542
        %572 = vmatprep.subr.bf16.mxu0 0
        %573 = vmatpush1.bf16.msra.mxu0 %v543
        %574 = vmatprep.subr.bf16.mxu0 0
        %575 = vmatpush1.bf16.msra.mxu0 %v544
        %576 = vmatprep.subr.bf16.mxu0 0
        %577 = vmatpush1.bf16.msra.mxu0 %v545
        %578 = vmatprep.subr.bf16.mxu0 0
        %579 = vmatpush1.bf16.msra.mxu0 %v546
        %580 = vmatprep.subr.bf16.mxu0 0
        %581 = vmatpush1.bf16.msra.mxu0 %v547
        %582 = vmatprep.subr.bf16.mxu0 0
        %583 = vmatpush1.bf16.msra.mxu0 %v548
        %584 = vmatprep.subr.bf16.mxu0 0
        %585 = vmatpush1.bf16.msra.mxu0 %v549
        %586 = vmatprep.subr.bf16.mxu0 0
        %587 = vmatpush1.bf16.msra.mxu0 %v550
        %588 = vmatprep.subr.bf16.mxu0 0
        %589 = vmatpush1.bf16.msra.mxu0 %v551
        %590 = vmatprep.subr.bf16.mxu0 0
        %591 = vmatpush1.bf16.msra.mxu0 %v552
        %592 = vmatprep.subr.bf16.mxu0 0
        %593 = vmatpush1.bf16.msra.mxu0 0
        %594 = vmatprep.subr.bf16.mxu0 0
        %595 = vmatpush1.bf16.msra.mxu0 0
        %596 = vmatprep.subr.bf16.mxu0 0
        %597 = vmatpush1.bf16.msra.mxu0 0
        %598 = vmatprep.subr.bf16.mxu0 0
        %599 = vmatpush1.bf16.msra.mxu0 0
        %600 = vmatprep.mubr.bf16.mxu0 %v566
        %601 = vmatmul.mubr.bf16.gmra.mrb[0].mxu0 %v467
        %v602 = vpop.f32.mrb[0].mxu0
        %v603 = vadd.f32 0.0, %v602
        %v604 = vpop.f32.mrb[0].mxu0
        %v605 = vpop.f32.mrb[0].mxu0
        %v606 = vpop.f32.mrb[0].mxu0
        %607 = vdwg.mxu0
        %v608 = vld [vmem:[%s5] sm:$0x1]
        %v610 = vlaneseq
        %v611 = vshrl.u32 %v610, 7
        %v612 = vsub.s32 0, %v611
        %v613 = vrot.slane %v608, %v612
        %v615 = vmul.f32 %v603, %v613
        %v616 = vld [vmem:[%s6] sm:$0x1]
        %v618 = vlaneseq
        %v619 = vshrl.u32 %v618, 7
        %v620 = vsub.s32 0, %v619
        %v621 = vrot.slane %v616, %v620
        %v623 = vadd.f32 %v615, %v621
        %v624 = vmax.f32 %v623, 0.0
        %626 = vrot.lane.b32.xlu0 %v624, 64
        %v627 = vpop.permute.xlu0 %626
        %v629 = vmax.f32 %v624, %v627
        %v631 = vrot.slane %v629, 4
        %v633 = vmax.f32 %v629, %v631
        %v634 = vpack.c.bf16 %v633, %v633
        %v635 = vld [vmem:[%s7] sm:$0xf]
        %v636 = vld [vmem:[%s7 + $0x4] sm:$0xf]
        %v637 = vld [vmem:[%s7 + $0x8] sm:$0xf]
        %v638 = vld [vmem:[%s7 + $0xc] sm:$0xf]
        %v639 = vld [vmem:[%s7 + $0x10] sm:$0xf]
        %v640 = vld [vmem:[%s7 + $0x14] sm:$0xf]
        %v641 = vld [vmem:[%s7 + $0x18] sm:$0xf]
        %v642 = vld [vmem:[%s7 + $0x1c] sm:$0xf]
        %s643 = scalar_lea.vmem %s7, 32
        %v644 = vld [vmem:[%s643] sm:$0xf]
        %v645 = vld [vmem:[%s643 + $0x4] sm:$0xf]
        %v646 = vld [vmem:[%s643 + $0x8] sm:$0xf]
        %v647 = vld [vmem:[%s643 + $0xc] sm:$0xf]
        %v648 = vld [vmem:[%s643 + $0x10] sm:$0xf]
        %v649 = vld [vmem:[%s643 + $0x14] sm:$0xf]
        %v650 = vld [vmem:[%s643 + $0x18] sm:$0xf]
        %v651 = vld [vmem:[%s643 + $0x1c] sm:$0xf]
        %v653 = vshrl.u32 %v634, 16
        %v663 = vunpack.c.l.b16 %v644
        %v664 = vunpack.c.l.b16 %v645
        %v665 = vunpack.c.l.b16 %v646
        %v666 = vunpack.c.l.b16 %v647
        %v667 = vunpack.c.l.b16 %v648
        %v668 = vunpack.c.l.b16 %v649
        %v669 = vunpack.c.l.b16 %v650
        %v670 = vunpack.c.l.b16 %v651
        %v671 = vpack.c.b16 %v664, %v663
        %v672 = vpack.c.b16 %v666, %v665
        %v673 = vpack.c.b16 %v668, %v667
        %v674 = vpack.c.b16 %v670, %v669
        %v680 = vsel %vm452, %v653, 0
        %682 = vmatprep.subr.bf16.mxu0 0
        %683 = vmatpush1.bf16.msra.mxu0 %v671
        %684 = vmatprep.subr.bf16.mxu0 0
        %685 = vmatpush1.bf16.msra.mxu0 %v672
        %686 = vmatprep.subr.bf16.mxu0 0
        %687 = vmatpush1.bf16.msra.mxu0 %v673
        %688 = vmatprep.subr.bf16.mxu0 0
        %689 = vmatpush1.bf16.msra.mxu0 %v674
        %690 = vmatprep.subr.bf16.mxu0 0
        %691 = vmatpush1.bf16.msra.mxu0 0
        %692 = vmatprep.subr.bf16.mxu0 0
        %693 = vmatpush1.bf16.msra.mxu0 0
        %694 = vmatprep.subr.bf16.mxu0 0
        %695 = vmatpush1.bf16.msra.mxu0 0
        %696 = vmatprep.subr.bf16.mxu0 0
        %697 = vmatpush1.bf16.msra.mxu0 0
        %698 = vmatprep.subr.bf16.mxu0 0
        %699 = vmatpush1.bf16.msra.mxu0 0
        %700 = vmatprep.subr.bf16.mxu0 0
        %701 = vmatpush1.bf16.msra.mxu0 0
        %702 = vmatprep.subr.bf16.mxu0 0
        %703 = vmatpush1.bf16.msra.mxu0 0
        %704 = vmatprep.subr.bf16.mxu0 0
        %705 = vmatpush1.bf16.msra.mxu0 0
        %706 = vmatprep.subr.bf16.mxu0 0
        %707 = vmatpush1.bf16.msra.mxu0 0
        %708 = vmatprep.subr.bf16.mxu0 0
        %709 = vmatpush1.bf16.msra.mxu0 0
        %710 = vmatprep.subr.bf16.mxu0 0
        %711 = vmatpush1.bf16.msra.mxu0 0
        %712 = vmatprep.subr.bf16.mxu0 0
        %713 = vmatpush1.bf16.msra.mxu0 0
        %714 = vmatprep.mubr.bf16.mxu0 0
        %715 = vmatmul.mubr.bf16.gmra.mrb[0].mxu0 %v680
        %v716 = vpop.f32.mrb[0].mxu0
        %v717 = vadd.f32 0.0, %v716
        %v718 = vpop.f32.mrb[0].mxu0
        %v719 = vpop.f32.mrb[0].mxu0
        %v720 = vpop.f32.mrb[0].mxu0
        %721 = vdwg.mxu0
        %s722 = scalar_lea.vmem %s7, 64
        %v723 = vld [vmem:[%s722] sm:$0xf]
        %v724 = vld [vmem:[%s722 + $0x4] sm:$0xf]
        %v725 = vld [vmem:[%s722 + $0x8] sm:$0xf]
        %v726 = vld [vmem:[%s722 + $0xc] sm:$0xf]
        %v727 = vld [vmem:[%s722 + $0x10] sm:$0xf]
        %v728 = vld [vmem:[%s722 + $0x14] sm:$0xf]
        %v729 = vld [vmem:[%s722 + $0x18] sm:$0xf]
        %v730 = vld [vmem:[%s722 + $0x1c] sm:$0xf]
        %s731 = scalar_lea.vmem %s7, 96
        %v732 = vld [vmem:[%s731] sm:$0xf]
        %v733 = vld [vmem:[%s731 + $0x4] sm:$0xf]
        %v734 = vld [vmem:[%s731 + $0x8] sm:$0xf]
        %v735 = vld [vmem:[%s731 + $0xc] sm:$0xf]
        %v736 = vld [vmem:[%s731 + $0x10] sm:$0xf]
        %v737 = vld [vmem:[%s731 + $0x14] sm:$0xf]
        %v738 = vld [vmem:[%s731 + $0x18] sm:$0xf]
        %v739 = vld [vmem:[%s731 + $0x1c] sm:$0xf]
        %v740 = vrot.slane %v653, 1
        %v749 = vunpack.c.l.b16 %v732
        %v750 = vunpack.c.l.b16 %v733
        %v751 = vunpack.c.l.b16 %v734
        %v752 = vunpack.c.l.b16 %v735
        %v753 = vunpack.c.l.b16 %v736
        %v754 = vunpack.c.l.b16 %v737
        %v755 = vunpack.c.l.b16 %v738
        %v756 = vunpack.c.l.b16 %v739
        %v757 = vpack.c.b16 %v750, %v749
        %v758 = vpack.c.b16 %v752, %v751
        %v759 = vpack.c.b16 %v754, %v753
        %v760 = vpack.c.b16 %v756, %v755
        %v766 = vsel %vm452, %v740, 0
        %768 = vmatprep.subr.bf16.mxu0 0
        %769 = vmatpush1.bf16.msra.mxu0 %v757
        %770 = vmatprep.subr.bf16.mxu0 0
        %771 = vmatpush1.bf16.msra.mxu0 %v758
        %772 = vmatprep.subr.bf16.mxu0 0
        %773 = vmatpush1.bf16.msra.mxu0 %v759
        %774 = vmatprep.subr.bf16.mxu0 0
        %775 = vmatpush1.bf16.msra.mxu0 %v760
        %776 = vmatprep.subr.bf16.mxu0 0
        %777 = vmatpush1.bf16.msra.mxu0 0
        %778 = vmatprep.subr.bf16.mxu0 0
        %779 = vmatpush1.bf16.msra.mxu0 0
        %780 = vmatprep.subr.bf16.mxu0 0
        %781 = vmatpush1.bf16.msra.mxu0 0
        %782 = vmatprep.subr.bf16.mxu0 0
        %783 = vmatpush1.bf16.msra.mxu0 0
        %784 = vmatprep.subr.bf16.mxu0 0
        %785 = vmatpush1.bf16.msra.mxu0 0
        %786 = vmatprep.subr.bf16.mxu0 0
        %787 = vmatpush1.bf16.msra.mxu0 0
        %788 = vmatprep.subr.bf16.mxu0 0
        %789 = vmatpush1.bf16.msra.mxu0 0
        %790 = vmatprep.subr.bf16.mxu0 0
        %791 = vmatpush1.bf16.msra.mxu0 0
        %792 = vmatprep.subr.bf16.mxu0 0
        %793 = vmatpush1.bf16.msra.mxu0 0
        %794 = vmatprep.subr.bf16.mxu0 0
        %795 = vmatpush1.bf16.msra.mxu0 0
        %796 = vmatprep.subr.bf16.mxu0 0
        %797 = vmatpush1.bf16.msra.mxu0 0
        %798 = vmatprep.subr.bf16.mxu0 0
        %799 = vmatpush1.bf16.msra.mxu0 0
        %800 = vmatprep.mubr.bf16.mxu0 0
        %801 = vmatmul.mubr.bf16.gmra.mrb[0].mxu0 %v766
        %v802 = vpop.f32.mrb[0].mxu0
        %v803 = vadd.f32 0.0, %v802
        %v804 = vpop.f32.mrb[0].mxu0
        %v805 = vpop.f32.mrb[0].mxu0
        %v806 = vpop.f32.mrb[0].mxu0
        %807 = vdwg.mxu0
        %v816 = vunpack.c.l.b16 %v635
        %v817 = vunpack.c.l.b16 %v636
        %v818 = vunpack.c.l.b16 %v637
        %v819 = vunpack.c.l.b16 %v638
        %v820 = vunpack.c.l.b16 %v639
        %v821 = vunpack.c.l.b16 %v640
        %v822 = vunpack.c.l.b16 %v641
        %v823 = vunpack.c.l.b16 %v642
        %v824 = vpack.c.b16 %v817, %v816
        %v825 = vpack.c.b16 %v819, %v818
        %v826 = vpack.c.b16 %v821, %v820
        %v827 = vpack.c.b16 %v823, %v822
        %v832 = vsel %vm452, %v634, 0
        %834 = vmatprep.subr.bf16.mxu0 0
        %835 = vmatpush1.bf16.msra.mxu0 %v824
        %836 = vmatprep.subr.bf16.mxu0 0
        %837 = vmatpush1.bf16.msra.mxu0 %v825
        %838 = vmatprep.subr.bf16.mxu0 0
        %839 = vmatpush1.bf16.msra.mxu0 %v826
        %840 = vmatprep.subr.bf16.mxu0 0
        %841 = vmatpush1.bf16.msra.mxu0 %v827
        %842 = vmatprep.subr.bf16.mxu0 0
        %843 = vmatpush1.bf16.msra.mxu0 0
        %844 = vmatprep.subr.bf16.mxu0 0
        %845 = vmatpush1.bf16.msra.mxu0 0
        %846 = vmatprep.subr.bf16.mxu0 0
        %847 = vmatpush1.bf16.msra.mxu0 0
        %848 = vmatprep.subr.bf16.mxu0 0
        %849 = vmatpush1.bf16.msra.mxu0 0
        %850 = vmatprep.subr.bf16.mxu0 0
        %851 = vmatpush1.bf16.msra.mxu0 0
        %852 = vmatprep.subr.bf16.mxu0 0
        %853 = vmatpush1.bf16.msra.mxu0 0
        %854 = vmatprep.subr.bf16.mxu0 0
        %855 = vmatpush1.bf16.msra.mxu0 0
        %856 = vmatprep.subr.bf16.mxu0 0
        %857 = vmatpush1.bf16.msra.mxu0 0
        %858 = vmatprep.subr.bf16.mxu0 0
        %859 = vmatpush1.bf16.msra.mxu0 0
        %860 = vmatprep.subr.bf16.mxu0 0
        %861 = vmatpush1.bf16.msra.mxu0 0
        %862 = vmatprep.subr.bf16.mxu0 0
        %863 = vmatpush1.bf16.msra.mxu0 0
        %864 = vmatprep.subr.bf16.mxu0 0
        %865 = vmatpush1.bf16.msra.mxu0 0
        %866 = vmatprep.mubr.bf16.mxu0 0
        %867 = vmatmul.mubr.bf16.gmra.mrb[0].mxu0 %v832
        %v868 = vpop.f32.mrb[0].mxu0
        %v869 = vadd.f32 %v717, %v868
        %v870 = vpop.f32.mrb[0].mxu0
        %v871 = vpop.f32.mrb[0].mxu0
        %v872 = vpop.f32.mrb[0].mxu0
        %873 = vdwg.mxu0
        %v875 = vrot.slane %v634, 1
        %v884 = vunpack.c.l.b16 %v723
        %v885 = vunpack.c.l.b16 %v724
        %v886 = vunpack.c.l.b16 %v725
        %v887 = vunpack.c.l.b16 %v726
        %v888 = vunpack.c.l.b16 %v727
        %v889 = vunpack.c.l.b16 %v728
        %v890 = vunpack.c.l.b16 %v729
        %v891 = vunpack.c.l.b16 %v730
        %v892 = vpack.c.b16 %v885, %v884
        %v893 = vpack.c.b16 %v887, %v886
        %v894 = vpack.c.b16 %v889, %v888
        %v895 = vpack.c.b16 %v891, %v890
        %v901 = vsel %vm452, %v875, 0
        %903 = vmatprep.subr.bf16.mxu0 0
        %904 = vmatpush1.bf16.msra.mxu0 %v892
        %905 = vmatprep.subr.bf16.mxu0 0
        %906 = vmatpush1.bf16.msra.mxu0 %v893
        %907 = vmatprep.subr.bf16.mxu0 0
        %908 = vmatpush1.bf16.msra.mxu0 %v894
        %909 = vmatprep.subr.bf16.mxu0 0
        %910 = vmatpush1.bf16.msra.mxu0 %v895
        %911 = vmatprep.subr.bf16.mxu0 0
        %912 = vmatpush1.bf16.msra.mxu0 0
        %913 = vmatprep.subr.bf16.mxu0 0
        %914 = vmatpush1.bf16.msra.mxu0 0
        %915 = vmatprep.subr.bf16.mxu0 0
        %916 = vmatpush1.bf16.msra.mxu0 0
        %917 = vmatprep.subr.bf16.mxu0 0
        %918 = vmatpush1.bf16.msra.mxu0 0
        %919 = vmatprep.subr.bf16.mxu0 0
        %920 = vmatpush1.bf16.msra.mxu0 0
        %921 = vmatprep.subr.bf16.mxu0 0
        %922 = vmatpush1.bf16.msra.mxu0 0
        %923 = vmatprep.subr.bf16.mxu0 0
        %924 = vmatpush1.bf16.msra.mxu0 0
        %925 = vmatprep.subr.bf16.mxu0 0
        %926 = vmatpush1.bf16.msra.mxu0 0
        %927 = vmatprep.subr.bf16.mxu0 0
        %928 = vmatpush1.bf16.msra.mxu0 0
        %929 = vmatprep.subr.bf16.mxu0 0
        %930 = vmatpush1.bf16.msra.mxu0 0
        %931 = vmatprep.subr.bf16.mxu0 0
        %932 = vmatpush1.bf16.msra.mxu0 0
        %933 = vmatprep.subr.bf16.mxu0 0
        %934 = vmatpush1.bf16.msra.mxu0 0
        %935 = vmatprep.mubr.bf16.mxu0 0
        %936 = vmatmul.mubr.bf16.gmra.mrb[0].mxu0 %v901
        %v937 = vpop.f32.mrb[0].mxu0
        %v938 = vadd.f32 %v803, %v937
        %v939 = vpop.f32.mrb[0].mxu0
        %v940 = vpop.f32.mrb[0].mxu0
        %v941 = vpop.f32.mrb[0].mxu0
        %942 = vdwg.mxu0
        %v943 = vadd.f32 %v869, %v938
        %v944 = vld [vmem:[%s8] sm:$0x1]
        %v945 = vadd.f32 %v944, %v943
        %vm946 = vcmask 24576
        %v947 = vsel %vm946, %v945, -inf
        %948 = vmax.xlane.f32.xlu0 %v947
        %v949 = vpop.xlane.xlu0 %948
        %v950 = vsub.f32 %v945, %v949
        %v951 = vmul.f32 %v950, 1.442695
        %v952 = vpow.pop %v951
        %v953 = vsel %vm946, %v952, 0.0
        %954 = vadd.xlane.f32.xlu0 %v953
        %v955 = vpop.xlane.xlu0 %954
        %v956 = vrcp.pop %v955
        %v957 = vmul.f32 %v952, %v956
        %958 = vst.msk [vmem:[%s324] sm:$0x1] %vm946, %v957
        %s959 = sand.u32 %s225, 1
        %s960 = scalar_lea.sflag [#allocation3], %s959
        %s961 = sand.u32 %s225, 1
        %s962 = scalar_lea.vmem [#allocation2], %s961
        // Predicated region
        $region57: #{_lambda_.1} parent=55 // pred_check
          %p963 = pneg %p235
        $region58: #{_lambda_.1} parent=55 // pred_check_branch
          %965 = sbr.rel (%p963) target = $region60
        $region59: #{_lambda_.1} parent=55 // pred_region
          %s967 = ssub.s32 16, 16
          %968 = vsyncadd %s960, %s967
          %s969 = smul.addr %s23, 16
          %s970 = scalar_lea.hbm %s9, %s969
          %s972 = sshll.u32 %s962, 4
          %s973 = int_to_ptr.vmem [resolvable:$true] %s972
          %975 = dma.vmem_to_hbm [thread:$0]  %s973, 16, %s970, %s960
        $region60: #{_lambda_.1} parent=55 // pred_fallthru
          _
      $region56: #{_lambda_.1} parent=5 // pred_fallthru
        _
      %p976 = scmp.le.s32.totalorder 2, %s18
      // Predicated region
      $region61: #{_lambda_.1} parent=5 // pred_check
        %p977 = pneg %p976
      $region62: #{_lambda_.1} parent=5 // pred_check_branch
        %979 = sbr.rel (%p977) target = $region64
      $region63: #{_lambda_.1} parent=5 // pred_region
        %s980 = ssub.s32 %s18, 2
        // Predicated region
        $region65: #{_lambda_.1} parent=63 // pred_check
          %p981 = pneg %p241
        $region66: #{_lambda_.1} parent=63 // pred_check_branch
          %983 = sbr.rel (%p981) target = $region68
        $region67: #{_lambda_.1} parent=63 // pred_region
          %s984 = sand.u32 %s226, 1
          %s985 = scalar_lea.sflag [#allocation3], %s984
          %s986 = sand.u32 %s226, 1
          %s987 = scalar_lea.vmem [#allocation2], %s986
          %988 = dma.done %s985, 16
        $region68: #{_lambda_.1} parent=63 // pred_fallthru
          _
      $region64: #{_lambda_.1} parent=5 // pred_fallthru
        _
    $region6: #{_lambda_.1} parent=1 // loop_footer
      %s22 = sadd.s32 1, %s18
    $region7: #{_lambda_.1} parent=1 // loop_footer_branch
      %17 = sbr.rel target = $region3
    $region8: #{_lambda_.1} parent=1 // loop_exit
      _
    %989 = vsyncpa [#allocation3], 1
    %s990 = scalar_lea.sflag [#allocation3], 1
    %991 = vsyncpa %s990, 1

</llo_original>
